<compile_context>
chip_gen: v6e
topology: v6e:2x2x1
jax: 0.10.0
libtpu: 0.0.40
codegen_flags: <defaults>
</compile_context>

<pallas_src>
import jax
import jax.numpy as jnp
from jax.experimental import pallas as pl
from jax.experimental.pallas import tpu as pltpu

LANE = 128


def _round_up(v, m):
    return ((v + m - 1) // m) * m


def _tpu_vmem_and_cores():
    """Physical VMEM per TensorCore and TC count, with safe fallbacks."""
    cap = 64 * 2**20          # conservative fallback: v7x has 64 MiB / TC
    cores = 1
    try:
        info = pltpu.get_tpu_info()
        c = getattr(info, "vmem_capacity_bytes", None)
        if c:
            cap = int(c)
        for name in ("num_cores", "cores_per_chip", "num_tensorcores"):
            v = getattr(info, name, None)
            if v:
                cores = int(v)
                break
    except Exception:
        pass
    return cap, cores


def _make_mlp_kernel(n_layers, compute_dtype):
    """Builds a kernel: x_ref, (w0, b0, w1, b1, ...), out_ref."""

    def kernel(*refs):
        x_ref = refs[0]
        o_ref = refs[-1]
        params = refs[1:-1]

        h = x_ref[...]                                    # compute dtype tile
        for i in range(n_layers):
            w = params[2 * i][...]                        # [Din_pad, Dout_pad], compute dtype
            b = params[2 * i + 1][...]                    # [1, Dout_pad], f32 (broadcast rows)
            h = jnp.dot(h.astype(compute_dtype), w,
                        preferred_element_type=jnp.float32) + b
            if i != n_layers - 1:
                h = jnp.maximum(h, 0.0)                   # activation_fun = ReLU

        # Numerically stable softmax over dim=1 (features).  Padded class
        # lanes carry a -1e30 f32 bias so exp() -> 0 and they drop out of the
        # sum.  Exact division so each row sums to 1 to f32 precision.
        m = jnp.max(h, axis=1, keepdims=True)
        e = jnp.exp(h - m)
        denom = jnp.sum(e, axis=1, keepdims=True)
        o_ref[...] = (e / denom).astype(o_ref.dtype)

    return kernel


def pt_deep_forward(x, weights, biases, *, tm=512, compute_dtype=jnp.bfloat16):
    """Pallas forward pass of PTDeep.

    Lane-padded feature dims, resident single-copy weights in VMEM, batch
    tiled over a parallel grid axis.  Ragged batches are handled by
    zero-padding and slicing the result.
    """
    N, D = x.shape
    n_layers = len(weights)
    C = weights[-1].shape[1]

    vmem_cap, num_cores = _tpu_vmem_and_cores()
    itemsize = jnp.dtype(compute_dtype).itemsize
    sub = 16 if itemsize == 2 else (32 if itemsize == 1 else 8)

    # ---- pad all feature dims to lane multiples (exact: zero padding) ------
    dims = [D] + [w.shape[1] for w in weights]
    dims_pad = [_round_up(d, LANE) for d in dims]
    D_pad, C_pad = dims_pad[0], dims_pad[-1]

    x_p = jnp.pad(x, ((0, 0), (0, D_pad - D))) if D_pad != D else x
    x_p = x_p.astype(compute_dtype)                       # stream x in compute dtype

    w_p, b_p = [], []
    for i, (w, b) in enumerate(zip(weights, biases)):
        din, dout = w.shape
        wp = jnp.pad(w, ((0, dims_pad[i] - din), (0, dims_pad[i + 1] - dout)))
        if i == n_layers - 1:
            # padded classes get a huge negative logit -> softmax weight 0
            bp = jnp.pad(b, (0, dims_pad[i + 1] - dout), constant_values=-1e30)
        else:
            bp = jnp.pad(b, (0, dims_pad[i + 1] - dout))
        w_p.append(wp.astype(compute_dtype))
        b_p.append(bp.reshape(1, dims_pad[i + 1]).astype(jnp.float32))  # biases stay f32

    # ---- batch tiling: sublane-aligned tile, pad ragged batches -------------
    rows_min = _round_up(N, sub)
    tm_eff = min(rows_min, _round_up(tm, sub))
    if num_cores >= 2 and rows_min > 128 and rows_min <= tm_eff:
        # 2 TensorCores (v7x): ensure >= 2 parallel grid steps so both get work.
        tm_eff = min(tm_eff, max(128, _round_up(-(-rows_min // 2), 128)))
    N_pad = _round_up(N, tm_eff)
    if N_pad != x_p.shape[0]:
        x_p = jnp.pad(x_p, ((0, N_pad - x_p.shape[0]), (0, 0)))
    grid = (N_pad // tm_eff,)

    in_specs = [pl.BlockSpec((tm_eff, D_pad), lambda i: (i, 0))]
    for _ in range(n_layers):
        # whole-array, single-copy, resident in VMEM (no double buffering)
        in_specs.append(pl.BlockSpec(memory_space=pltpu.MemorySpace.VMEM))
        in_specs.append(pl.BlockSpec(memory_space=pltpu.MemorySpace.VMEM))

    # ---- VMEM budget: single-buffered params + double-buffered x/out tiles --
    param_bytes = sum(int(w.size) * w.dtype.itemsize for w in w_p) \
        + sum(int(b.size) * 4 for b in b_p)
    tile_bytes = 2 * tm_eff * D_pad * itemsize + 2 * tm_eff * C_pad * 4
    act_bytes = 3 * tm_eff * max(dims_pad) * 4            # live f32 intermediates
    headroom = 2 * 2**20
    vmem_limit = param_bytes + tile_bytes + act_bytes + headroom
    vmem_limit = int(min(max(vmem_limit, 16 * 2**20), vmem_cap - 4 * 2**20))

    flops = 2 * N_pad * sum(dims_pad[i] * dims_pad[i + 1] for i in range(n_layers))
    bytes_accessed = (int(x_p.size) * itemsize + N_pad * C_pad * 4 + param_bytes)
    cost = pl.CostEstimate(flops=flops, transcendentals=N_pad * C_pad,
                           bytes_accessed=bytes_accessed)

    args = [x_p]
    for wp, bp in zip(w_p, b_p):
        args.append(wp)
        args.append(bp)

    out = pl.pallas_call(
        _make_mlp_kernel(n_layers, compute_dtype),
        out_shape=jax.ShapeDtypeStruct((N_pad, C_pad), jnp.float32),
        grid=grid,
        in_specs=in_specs,
        out_specs=pl.BlockSpec((tm_eff, C_pad), lambda i: (i, 0)),
        compiler_params=pltpu.CompilerParams(
            dimension_semantics=("parallel",),
            vmem_limit_bytes=vmem_limit),
        cost_estimate=cost,
    )(*args)

    return out[:N, :C]


def init_params(net_conf, key):
    """Deterministic init matching torch: W ~ N(0, 0.1), b = 0."""
    weights, biases = [], []
    for i in range(len(net_conf) - 1):
        key, sub = jax.random.split(key)
        w = 0.1 * jax.random.normal(
            sub, (net_conf[i], net_conf[i + 1]), dtype=jnp.float32)
        b = jnp.zeros((net_conf[i + 1],), dtype=jnp.float32)
        weights.append(w)
        biases.append(b)
    return weights, biases


def reference_forward(x, weights, biases):
    """Pure-JAX reference mirroring PTDeep.forward (ReLU activation)."""
    h = x
    for i, (w, b) in enumerate(zip(weights, biases)):
        h = h @ w + b
        if i != len(weights) - 1:
            h = jnp.maximum(h, 0.0)
    return jax.nn.softmax(h, axis=1)


if __name__ == "__main__":
    key = jax.random.PRNGKey(0)

    # net_conf = [in_dim, hidden, hidden, n_classes]
    net_conf = [16, 32, 32, 4]
    N = 50  # deliberately ragged batch (not a multiple of 8/16)

    key, kx = jax.random.split(key)
    x = jax.random.normal(kx, (N, net_conf[0]), dtype=jnp.float32)
    weights, biases = init_params(net_conf, key)

    ref = reference_forward(x, weights, biases)

    # f32 compute path (tight tolerance)
    out_f32 = jax.block_until_ready(
        pt_deep_forward(x, weights, biases, tm=512, compute_dtype=jnp.float32))
    assert out_f32.shape == (N, net_conf[-1])
    assert jnp.allclose(out_f32, ref, atol=1e-3, rtol=1e-3), "f32 mismatch vs reference"
    assert jnp.allclose(jnp.sum(out_f32, axis=1), 1.0, atol=1e-3), "f32 rows must sum to 1"

    # default bf16 matmul path (f32 accumulation + f32 softmax), looser tolerance
    out_bf16 = jax.block_until_ready(
        pt_deep_forward(x, weights, biases))
    assert out_bf16.shape == (N, net_conf[-1])
    assert jnp.allclose(out_bf16, ref, atol=5e-2, rtol=5e-2), "bf16 mismatch vs reference"
    assert jnp.allclose(jnp.sum(out_bf16, axis=1), 1.0, atol=1e-3), "bf16 rows must sum to 1"

    print("KERNEL_OK")
</pallas_src>

<mosaic_0001>
module attributes {stable_mosaic.version = 11 : i64} {
  func.func @kernel(%arg0: i32, %arg1: memref<56x128xf32, #tpu.memory_space<vmem>>, %arg2: memref<128x128xf32, #tpu.memory_space<vmem>>, %arg3: memref<1x128xf32, #tpu.memory_space<vmem>>, %arg4: memref<128x128xf32, #tpu.memory_space<vmem>>, %arg5: memref<1x128xf32, #tpu.memory_space<vmem>>, %arg6: memref<128x128xf32, #tpu.memory_space<vmem>>, %arg7: memref<1x128xf32, #tpu.memory_space<vmem>>, %arg8: memref<56x128xf32, #tpu.memory_space<vmem>>) attributes {dimension_semantics = [#tpu.dimension_semantics<parallel>], iteration_bounds = array<i64: 1>, scalar_prefetch = 0 : i64, scratch_operands = 0 : i64, tpu.core_type = #tpu.core_type<tc>, window_params = [{transform_indices = @transform_0, window_bounds = array<i64: 56, 128>}, {pipeline_mode = #tpu.pipeline_mode<synchronous>, transform_indices = @transform_1, window_bounds = array<i64: 128, 128>}, {pipeline_mode = #tpu.pipeline_mode<synchronous>, transform_indices = @transform_2, window_bounds = array<i64: 1, 128>}, {pipeline_mode = #tpu.pipeline_mode<synchronous>, transform_indices = @transform_3, window_bounds = array<i64: 128, 128>}, {pipeline_mode = #tpu.pipeline_mode<synchronous>, transform_indices = @transform_4, window_bounds = array<i64: 1, 128>}, {pipeline_mode = #tpu.pipeline_mode<synchronous>, transform_indices = @transform_5, window_bounds = array<i64: 128, 128>}, {pipeline_mode = #tpu.pipeline_mode<synchronous>, transform_indices = @transform_6, window_bounds = array<i64: 1, 128>}, {transform_indices = @transform_7, window_bounds = array<i64: 56, 128>}]} {
    %c0 = arith.constant 0 : index
    %c0_0 = arith.constant 0 : index
    %0 = vector.load %arg1[%c0, %c0_0] : memref<56x128xf32, #tpu.memory_space<vmem>>, vector<56x128xf32>
    %c0_1 = arith.constant 0 : index
    %c0_2 = arith.constant 0 : index
    %1 = vector.load %arg2[%c0_1, %c0_2] : memref<128x128xf32, #tpu.memory_space<vmem>>, vector<128x128xf32>
    %c0_3 = arith.constant 0 : index
    %c0_4 = arith.constant 0 : index
    %2 = vector.load %arg3[%c0_3, %c0_4] : memref<1x128xf32, #tpu.memory_space<vmem>>, vector<1x128xf32>
    %cst = arith.constant dense<0.000000e+00> : vector<56x128xf32>
    %3 = tpu.matmul %0, %1, %cst {dimension_numbers = #tpu.dot_dimension_numbers<[1], [0], [0], [1], [0, 0, 1, 1], [], []>} : vector<56x128xf32>, vector<128x128xf32>, vector<56x128xf32> -> vector<56x128xf32>
    %4 = vector.broadcast %2 : vector<1x128xf32> to vector<56x128xf32>
    %5 = arith.addf %3, %4 : vector<56x128xf32>
    %cst_5 = arith.constant 0.000000e+00 : f32
    %6 = vector.broadcast %cst_5 : f32 to vector<56x128xf32>
    %7 = arith.maximumf %5, %6 : vector<56x128xf32>
    %c0_6 = arith.constant 0 : index
    %c0_7 = arith.constant 0 : index
    %8 = vector.load %arg4[%c0_6, %c0_7] : memref<128x128xf32, #tpu.memory_space<vmem>>, vector<128x128xf32>
    %c0_8 = arith.constant 0 : index
    %c0_9 = arith.constant 0 : index
    %9 = vector.load %arg5[%c0_8, %c0_9] : memref<1x128xf32, #tpu.memory_space<vmem>>, vector<1x128xf32>
    %cst_10 = arith.constant dense<0.000000e+00> : vector<56x128xf32>
    %10 = tpu.matmul %7, %8, %cst_10 {dimension_numbers = #tpu.dot_dimension_numbers<[1], [0], [0], [1], [0, 0, 1, 1], [], []>} : vector<56x128xf32>, vector<128x128xf32>, vector<56x128xf32> -> vector<56x128xf32>
    %11 = vector.broadcast %9 : vector<1x128xf32> to vector<56x128xf32>
    %12 = arith.addf %10, %11 : vector<56x128xf32>
    %cst_11 = arith.constant 0.000000e+00 : f32
    %13 = vector.broadcast %cst_11 : f32 to vector<56x128xf32>
    %14 = arith.maximumf %12, %13 : vector<56x128xf32>
    %c0_12 = arith.constant 0 : index
    %c0_13 = arith.constant 0 : index
    %15 = vector.load %arg6[%c0_12, %c0_13] : memref<128x128xf32, #tpu.memory_space<vmem>>, vector<128x128xf32>
    %c0_14 = arith.constant 0 : index
    %c0_15 = arith.constant 0 : index
    %16 = vector.load %arg7[%c0_14, %c0_15] : memref<1x128xf32, #tpu.memory_space<vmem>>, vector<1x128xf32>
    %cst_16 = arith.constant dense<0.000000e+00> : vector<56x128xf32>
    %17 = tpu.matmul %14, %15, %cst_16 {dimension_numbers = #tpu.dot_dimension_numbers<[1], [0], [0], [1], [0, 0, 1, 1], [], []>} : vector<56x128xf32>, vector<128x128xf32>, vector<56x128xf32> -> vector<56x128xf32>
    %18 = vector.broadcast %16 : vector<1x128xf32> to vector<56x128xf32>
    %19 = arith.addf %17, %18 : vector<56x128xf32>
    %cst_17 = arith.constant dense<0xFF800000> : vector<56xf32>
    %20 = vector.multi_reduction <maximumf>, %19, %cst_17 [1] : vector<56x128xf32> to vector<56xf32>
    %21 = vector.shape_cast %20 : vector<56xf32> to vector<56x1xf32>
    %22 = vector.broadcast %21 : vector<56x1xf32> to vector<56x128xf32>
    %23 = arith.subf %19, %22 : vector<56x128xf32>
    %24 = math.exp %23 : vector<56x128xf32>
    %cst_18 = arith.constant dense<0.000000e+00> : vector<56xf32>
    %25 = vector.multi_reduction <add>, %24, %cst_18 [1] : vector<56x128xf32> to vector<56xf32>
    %26 = vector.shape_cast %25 : vector<56xf32> to vector<56x1xf32>
    %27 = vector.broadcast %26 : vector<56x1xf32> to vector<56x128xf32>
    %28 = arith.divf %24, %27 : vector<56x128xf32>
    %c0_19 = arith.constant 0 : index
    %c0_20 = arith.constant 0 : index
    %29 = vector.load %arg8[%c0_19, %c0_20] : memref<56x128xf32, #tpu.memory_space<vmem>>, vector<56x128xf32>
    tpu.vector_store %arg8[%c0_19, %c0_20], %28 {strides = array<i32>} : memref<56x128xf32, #tpu.memory_space<vmem>>, vector<56x128xf32>,
    return
  }
  func.func @transform_0(%arg0: i32) -> (i32, i32) {
    %c0_i32 = arith.constant 0 : i32
    %c0_i32_0 = arith.constant 0 : i32
    return %arg0, %c0_i32 : i32, i32
  }
  func.func @transform_1(%arg0: i32) -> (i32, i32) {
    %c0_i32 = arith.constant 0 : i32
    %c0_i32_0 = arith.constant 0 : i32
    %c0_i32_1 = arith.constant 0 : i32
    return %c0_i32, %c0_i32_0 : i32, i32
  }
  func.func @transform_2(%arg0: i32) -> (i32, i32) {
    %c0_i32 = arith.constant 0 : i32
    %c0_i32_0 = arith.constant 0 : i32
    %c0_i32_1 = arith.constant 0 : i32
    return %c0_i32, %c0_i32_0 : i32, i32
  }
  func.func @transform_3(%arg0: i32) -> (i32, i32) {
    %c0_i32 = arith.constant 0 : i32
    %c0_i32_0 = arith.constant 0 : i32
    %c0_i32_1 = arith.constant 0 : i32
    return %c0_i32, %c0_i32_0 : i32, i32
  }
  func.func @transform_4(%arg0: i32) -> (i32, i32) {
    %c0_i32 = arith.constant 0 : i32
    %c0_i32_0 = arith.constant 0 : i32
    %c0_i32_1 = arith.constant 0 : i32
    return %c0_i32, %c0_i32_0 : i32, i32
  }
  func.func @transform_5(%arg0: i32) -> (i32, i32) {
    %c0_i32 = arith.constant 0 : i32
    %c0_i32_0 = arith.constant 0 : i32
    %c0_i32_1 = arith.constant 0 : i32
    return %c0_i32, %c0_i32_0 : i32, i32
  }
  func.func @transform_6(%arg0: i32) -> (i32, i32) {
    %c0_i32 = arith.constant 0 : i32
    %c0_i32_0 = arith.constant 0 : i32
    %c0_i32_1 = arith.constant 0 : i32
    return %c0_i32, %c0_i32_0 : i32, i32
  }
  func.func @transform_7(%arg0: i32) -> (i32, i32) {
    %c0_i32 = arith.constant 0 : i32
    %c0_i32_0 = arith.constant 0 : i32
    return %arg0, %c0_i32 : i32, i32
  }
}

</mosaic_0001>

<llo_original>
// kernel: tpu_custom_call.1
$region0: #{tpu_custom_call.1}
  #allocation0 [shape = 'u32[]', space=smem, size = 0x4, offset = 0x4, fixed_abs, tag = 'smem constant byte address 0x4 - core index']
  #allocation1 [shape = 'u32[144,128]{1,0:T(1,128)}', space=vmem, size = 0x12000, scoped, tag = 'internal scratch']
  %s0 = inlined_call_operand.hbm [shape: f32[56,128], index: 0, kind: input, shape index: {}]
  %s1 = inlined_call_operand.hbm [shape: f32[128,128], index: 1, kind: input, shape index: {}]
  %s2 = inlined_call_operand.vmem [shape: f32[1,128], index: 2, kind: input, shape index: {}]
  %s3 = inlined_call_operand.hbm [shape: f32[128,128], index: 3, kind: input, shape index: {}]
  %s4 = inlined_call_operand.vmem [shape: f32[1,128], index: 4, kind: input, shape index: {}]
  %s5 = inlined_call_operand.hbm [shape: f32[128,128], index: 5, kind: input, shape index: {}]
  %s6 = inlined_call_operand.vmem [shape: f32[1,128], index: 6, kind: input, shape index: {}]
  %s7 = inlined_call_operand.hbm [shape: f32[56,128], index: 7, kind: output, shape index: {}]
  %s8 = sld [smem:[#allocation0]]
  $region54: #{tpu_custom_call.1} parent=0
    _
  %s10 = ssub.s32 1, %s8
  %s11 = scalar_select 0, %s10, %s8
  $region1: #{tpu_custom_call.1} parent=0
    #allocation2 [shape = 'u8[28672]{0}', space=vmem, size = 0x7000, scoped, tag = 'input window, operand 0, single buffered']
    #allocation3 [shape = 's32[1]{0}', space=sflag, size = 0x4, scoped, tag = 'scoped memory for tpu_custom_call.1']
    #allocation4 [shape = 's32[1]{0}', space=sflag, size = 0x4, scoped, tag = 'scoped memory for tpu_custom_call.1']
    #allocation5 [shape = 'u8[65536]{0}', space=vmem, size = 0x10000, scoped, tag = 'input window, operand 1, single buffered']
    #allocation6 [shape = 's32[1]{0}', space=sflag, size = 0x4, scoped, tag = 'scoped memory for tpu_custom_call.1']
    #allocation7 [shape = 'u8[65536]{0}', space=vmem, size = 0x10000, scoped, tag = 'input window, operand 3, single buffered']
    #allocation8 [shape = 'u8[65536]{0}', space=vmem, size = 0x10000, scoped, tag = 'input window, operand 5, single buffered']
    #allocation9 [shape = 's32[1]{0}', space=sflag, size = 0x4, scoped, tag = 'scoped memory for tpu_custom_call.1']
    #allocation10 [shape = 'u8[28672]{0}', space=vmem, size = 0x7000, scoped, tag = 'output window, operand 0, single buffered']
    %12 = vsyncpa [#allocation3], 0
    %13 = vsyncpa [#allocation6], 0
    %14 = vsyncpa [#allocation9], 0
    %15 = vsyncpa [#allocation4], 0
    // Predicated region
    $region2: #{tpu_custom_call.1} parent=1 // pred_check
      _
    $region3: #{tpu_custom_call.1} parent=1 // pred_check_branch
      %17 = sbr.rel (0) target = $region5
    $region4: #{tpu_custom_call.1} parent=1 // pred_region
      %s19 = ssub.s32 896, 896
      %20 = vsyncadd [#allocation3], %s19
      %s21 = sshll.u32 [#allocation2], 4
      %s22 = int_to_ptr.vmem [resolvable:$true] %s21
      %27 = dma.hbm_to_vmem [thread:$0]  %s0, 896, %s22, [#allocation3], 128, 128, 8
    $region5: #{tpu_custom_call.1} parent=1 // pred_fallthru
      _
    // Predicated region
    $region6: #{tpu_custom_call.1} parent=1 // pred_check
      _
    $region7: #{tpu_custom_call.1} parent=1 // pred_check_branch
      %29 = sbr.rel (0) target = $region9
    $region8: #{tpu_custom_call.1} parent=1 // pred_region
      %s31 = ssub.s32 2048, 2048
      %32 = vsyncadd [#allocation6], %s31
      %s33 = sshll.u32 [#allocation5], 4
      %s34 = int_to_ptr.vmem [resolvable:$true] %s33
      %39 = dma.hbm_to_vmem [thread:$0]  %s1, 2048, %s34, [#allocation6], 128, 128, 8
    $region9: #{tpu_custom_call.1} parent=1 // pred_fallthru
      _
    // Predicated region
    $region10: #{tpu_custom_call.1} parent=1 // pred_check
      _
    $region11: #{tpu_custom_call.1} parent=1 // pred_check_branch
      %41 = sbr.rel (0) target = $region13
    $region12: #{tpu_custom_call.1} parent=1 // pred_region
      _
    $region13: #{tpu_custom_call.1} parent=1 // pred_fallthru
      _
    // Predicated region
    $region14: #{tpu_custom_call.1} parent=1 // pred_check
      _
    $region15: #{tpu_custom_call.1} parent=1 // pred_check_branch
      %43 = sbr.rel (0) target = $region17
    $region16: #{tpu_custom_call.1} parent=1 // pred_region
      %s45 = ssub.s32 2048, 2048
      %46 = vsyncadd [#allocation6], %s45
      %s47 = sshll.u32 [#allocation7], 4
      %s48 = int_to_ptr.vmem [resolvable:$true] %s47
      %53 = dma.hbm_to_vmem [thread:$0]  %s3, 2048, %s48, [#allocation6], 128, 128, 8
    $region17: #{tpu_custom_call.1} parent=1 // pred_fallthru
      _
    // Predicated region
    $region18: #{tpu_custom_call.1} parent=1 // pred_check
      _
    $region19: #{tpu_custom_call.1} parent=1 // pred_check_branch
      %55 = sbr.rel (0) target = $region21
    $region20: #{tpu_custom_call.1} parent=1 // pred_region
      _
    $region21: #{tpu_custom_call.1} parent=1 // pred_fallthru
      _
    // Predicated region
    $region22: #{tpu_custom_call.1} parent=1 // pred_check
      _
    $region23: #{tpu_custom_call.1} parent=1 // pred_check_branch
      %57 = sbr.rel (0) target = $region25
    $region24: #{tpu_custom_call.1} parent=1 // pred_region
      %s59 = ssub.s32 2048, 2048
      %60 = vsyncadd [#allocation9], %s59
      %s61 = sshll.u32 [#allocation8], 4
      %s62 = int_to_ptr.vmem [resolvable:$true] %s61
      %67 = dma.hbm_to_vmem [thread:$0]  %s5, 2048, %s62, [#allocation9], 128, 128, 8
    $region25: #{tpu_custom_call.1} parent=1 // pred_fallthru
      _
    // Predicated region
    $region26: #{tpu_custom_call.1} parent=1 // pred_check
      _
    $region27: #{tpu_custom_call.1} parent=1 // pred_check_branch
      %69 = sbr.rel (0) target = $region29
    $region28: #{tpu_custom_call.1} parent=1 // pred_region
      _
    $region29: #{tpu_custom_call.1} parent=1 // pred_fallthru
      _
    // Predicated region
    $region30: #{tpu_custom_call.1} parent=1 // pred_check
      _
    $region31: #{tpu_custom_call.1} parent=1 // pred_check_branch
      %71 = sbr.rel (0) target = $region33
    $region32: #{tpu_custom_call.1} parent=1 // pred_region
      %72 = dma.done [#allocation3], 896
    $region33: #{tpu_custom_call.1} parent=1 // pred_fallthru
      _
    // Predicated region
    $region34: #{tpu_custom_call.1} parent=1 // pred_check
      _
    $region35: #{tpu_custom_call.1} parent=1 // pred_check_branch
      %74 = sbr.rel (0) target = $region37
    $region36: #{tpu_custom_call.1} parent=1 // pred_region
      %75 = dma.done [#allocation6], 2048
    $region37: #{tpu_custom_call.1} parent=1 // pred_fallthru
      _
    // Predicated region
    $region38: #{tpu_custom_call.1} parent=1 // pred_check
      _
    $region39: #{tpu_custom_call.1} parent=1 // pred_check_branch
      %77 = sbr.rel (0) target = $region41
    $region40: #{tpu_custom_call.1} parent=1 // pred_region
      %78 = dma.done [#allocation6], 2048
    $region41: #{tpu_custom_call.1} parent=1 // pred_fallthru
      _
    // Predicated region
    $region42: #{tpu_custom_call.1} parent=1 // pred_check
      _
    $region43: #{tpu_custom_call.1} parent=1 // pred_check_branch
      %80 = sbr.rel (0) target = $region45
    $region44: #{tpu_custom_call.1} parent=1 // pred_region
      %81 = dma.done [#allocation9], 2048
    $region45: #{tpu_custom_call.1} parent=1 // pred_fallthru
      _
    %v82 = vld [vmem:[#allocation2] sm:$0xff]
    %v83 = vld [vmem:[#allocation2 + $0x8] sm:$0xff]
    %v84 = vld [vmem:[#allocation2 + $0x10] sm:$0xff]
    %v85 = vld [vmem:[#allocation2 + $0x18] sm:$0xff]
    %v86 = vld [vmem:[#allocation2 + $0x20] sm:$0xff]
    %v87 = vld [vmem:[#allocation2 + $0x28] sm:$0xff]
    %v88 = vld [vmem:[#allocation2 + $0x30] sm:$0xff]
    %v89 = vld [vmem:[#allocation5] sm:$0xff]
    %v90 = vld [vmem:[#allocation5 + $0x8] sm:$0xff]
    %v91 = vld [vmem:[#allocation5 + $0x10] sm:$0xff]
    %v92 = vld [vmem:[#allocation5 + $0x18] sm:$0xff]
    %v93 = vld [vmem:[#allocation5 + $0x20] sm:$0xff]
    %v94 = vld [vmem:[#allocation5 + $0x28] sm:$0xff]
    %v95 = vld [vmem:[#allocation5 + $0x30] sm:$0xff]
    %v96 = vld [vmem:[#allocation5 + $0x38] sm:$0xff]
    %v97 = vld [vmem:[#allocation5 + $0x40] sm:$0xff]
    %v98 = vld [vmem:[#allocation5 + $0x48] sm:$0xff]
    %v99 = vld [vmem:[#allocation5 + $0x50] sm:$0xff]
    %v100 = vld [vmem:[#allocation5 + $0x58] sm:$0xff]
    %v101 = vld [vmem:[#allocation5 + $0x60] sm:$0xff]
    %v102 = vld [vmem:[#allocation5 + $0x68] sm:$0xff]
    %v103 = vld [vmem:[#allocation5 + $0x70] sm:$0xff]
    %v104 = vld [vmem:[#allocation5 + $0x78] sm:$0xff]
    %v105 = vld [vmem:[%s2] sm:$0x1]
    %v107 = vlaneseq
    %v108 = vshrl.u32 %v107, 7
    %v109 = vsub.s32 0, %v108
    %v110 = vrot.slane %v105, %v109
    %112 = vmatprep.subr.mxu0 0.0
    %113 = vmatpush1.msra.mxu0 %v104
    %114 = vmatprep.subr.mxu0 0.0
    %115 = vmatpush1.msra.mxu0 %v103
    %116 = vmatprep.subr.mxu0 0.0
    %117 = vmatpush1.msra.mxu0 %v102
    %118 = vmatprep.subr.mxu0 0.0
    %119 = vmatpush1.msra.mxu0 %v101
    %120 = vmatprep.subr.mxu0 0.0
    %121 = vmatpush1.msra.mxu0 %v100
    %122 = vmatprep.subr.mxu0 0.0
    %123 = vmatpush1.msra.mxu0 %v99
    %124 = vmatprep.subr.mxu0 0.0
    %125 = vmatpush1.msra.mxu0 %v98
    %126 = vmatprep.subr.mxu0 0.0
    %127 = vmatpush1.msra.mxu0 %v97
    %128 = vmatprep.subr.mxu0 0.0
    %129 = vmatpush1.msra.mxu0 %v96
    %130 = vmatprep.subr.mxu0 0.0
    %131 = vmatpush1.msra.mxu0 %v95
    %132 = vmatprep.subr.mxu0 0.0
    %133 = vmatpush1.msra.mxu0 %v94
    %134 = vmatprep.subr.mxu0 0.0
    %135 = vmatpush1.msra.mxu0 %v93
    %136 = vmatprep.subr.mxu0 0.0
    %137 = vmatpush1.msra.mxu0 %v92
    %138 = vmatprep.subr.mxu0 0.0
    %139 = vmatpush1.msra.mxu0 %v91
    %140 = vmatprep.subr.mxu0 0.0
    %141 = vmatpush1.msra.mxu0 %v90
    %142 = vmatprep.subr.mxu0 0.0
    %143 = vmatpush1.msra.mxu0 %v89
    %144 = vmatprep.subr.mxu0 0.0
    %145 = vmatpush2.msra.mxu0 0.0
    %146 = vmatprep.subr.mxu0 0.0
    %147 = vmatpush2.msra.mxu0 0.0
    %148 = vmatprep.subr.mxu0 0.0
    %149 = vmatpush2.msra.mxu0 0.0
    %150 = vmatprep.subr.mxu0 0.0
    %151 = vmatpush2.msra.mxu0 0.0
    %152 = vmatprep.subr.mxu0 0.0
    %153 = vmatpush2.msra.mxu0 0.0
    %154 = vmatprep.subr.mxu0 0.0
    %155 = vmatpush2.msra.mxu0 0.0
    %156 = vmatprep.subr.mxu0 0.0
    %157 = vmatpush2.msra.mxu0 0.0
    %158 = vmatprep.subr.mxu0 0.0
    %159 = vmatpush2.msra.mxu0 0.0
    %160 = vmatprep.subr.mxu0 0.0
    %161 = vmatpush2.msra.mxu0 0.0
    %162 = vmatprep.subr.mxu0 0.0
    %163 = vmatpush2.msra.mxu0 0.0
    %164 = vmatprep.subr.mxu0 0.0
    %165 = vmatpush2.msra.mxu0 0.0
    %166 = vmatprep.subr.mxu0 0.0
    %167 = vmatpush2.msra.mxu0 0.0
    %168 = vmatprep.subr.mxu0 0.0
    %169 = vmatpush2.msra.mxu0 0.0
    %170 = vmatprep.subr.mxu0 0.0
    %171 = vmatpush2.msra.mxu0 0.0
    %172 = vmatprep.subr.mxu0 0.0
    %173 = vmatpush2.msra.mxu0 0.0
    %174 = vmatprep.subr.mxu0 0.0
    %175 = vmatpush2.msra.mxu0 0.0
    %176 = vmatprep.mubr.f32.mxu0 0.0
    %177 = vmatmul.mubr.f32.gmra.mxu0 %v82
    %v178 = vpop.f32.mrf.mxu0
    %v179 = vadd.f32 %v110, %v178
    %v180 = vpop.f32.mrf.mxu0
    %181 = vmatprep.mubr.f32.mxu0 0.0
    %182 = vmatmul.mubr.f32.gmra.mxu0 %v83
    %v183 = vpop.f32.mrf.mxu0
    %v184 = vadd.f32 %v110, %v183
    %v185 = vpop.f32.mrf.mxu0
    %186 = vmatprep.mubr.f32.mxu0 0.0
    %187 = vmatmul.mubr.f32.gmra.mxu0 %v84
    %v188 = vpop.f32.mrf.mxu0
    %v189 = vadd.f32 %v110, %v188
    %v190 = vpop.f32.mrf.mxu0
    %191 = vmatprep.mubr.f32.mxu0 0.0
    %192 = vmatmul.mubr.f32.gmra.mxu0 %v85
    %v193 = vpop.f32.mrf.mxu0
    %v194 = vadd.f32 %v110, %v193
    %v195 = vpop.f32.mrf.mxu0
    %196 = vmatprep.mubr.f32.mxu0 0.0
    %197 = vmatmul.mubr.f32.gmra.mxu0 %v86
    %v198 = vpop.f32.mrf.mxu0
    %v199 = vadd.f32 %v110, %v198
    %v200 = vpop.f32.mrf.mxu0
    %201 = vmatprep.mubr.f32.mxu0 0.0
    %202 = vmatmul.mubr.f32.gmra.mxu0 %v87
    %v203 = vpop.f32.mrf.mxu0
    %v204 = vadd.f32 %v110, %v203
    %v205 = vpop.f32.mrf.mxu0
    %206 = vmatprep.mubr.f32.mxu0 0.0
    %207 = vmatmul.mubr.f32.gmra.mxu0 %v88
    %v208 = vpop.f32.mrf.mxu0
    %v209 = vadd.f32 %v110, %v208
    %v210 = vpop.f32.mrf.mxu0
    %211 = vdwg.mxu0
    %v212 = vmax.f32 %v179, 0.0
    %v213 = vmax.f32 %v184, 0.0
    %v214 = vmax.f32 %v189, 0.0
    %v215 = vmax.f32 %v194, 0.0
    %v216 = vmax.f32 %v199, 0.0
    %v217 = vmax.f32 %v204, 0.0
    %v218 = vmax.f32 %v209, 0.0
    %v219 = vld [vmem:[#allocation7] sm:$0xff]
    %v220 = vld [vmem:[#allocation7 + $0x8] sm:$0xff]
    %v221 = vld [vmem:[#allocation7 + $0x10] sm:$0xff]
    %v222 = vld [vmem:[#allocation7 + $0x18] sm:$0xff]
    %v223 = vld [vmem:[#allocation7 + $0x20] sm:$0xff]
    %v224 = vld [vmem:[#allocation7 + $0x28] sm:$0xff]
    %v225 = vld [vmem:[#allocation7 + $0x30] sm:$0xff]
    %v226 = vld [vmem:[#allocation7 + $0x38] sm:$0xff]
    %v227 = vld [vmem:[#allocation7 + $0x40] sm:$0xff]
    %v228 = vld [vmem:[#allocation7 + $0x48] sm:$0xff]
    %v229 = vld [vmem:[#allocation7 + $0x50] sm:$0xff]
    %v230 = vld [vmem:[#allocation7 + $0x58] sm:$0xff]
    %v231 = vld [vmem:[#allocation7 + $0x60] sm:$0xff]
    %v232 = vld [vmem:[#allocation7 + $0x68] sm:$0xff]
    %v233 = vld [vmem:[#allocation7 + $0x70] sm:$0xff]
    %v234 = vld [vmem:[#allocation7 + $0x78] sm:$0xff]
    %v235 = vld [vmem:[%s4] sm:$0x1]
    %v237 = vlaneseq
    %v238 = vshrl.u32 %v237, 7
    %v239 = vsub.s32 0, %v238
    %v240 = vrot.slane %v235, %v239
    %242 = vmatprep.subr.mxu0 0.0
    %243 = vmatpush1.msra.mxu0 %v234
    %244 = vmatprep.subr.mxu0 0.0
    %245 = vmatpush1.msra.mxu0 %v233
    %246 = vmatprep.subr.mxu0 0.0
    %247 = vmatpush1.msra.mxu0 %v232
    %248 = vmatprep.subr.mxu0 0.0
    %249 = vmatpush1.msra.mxu0 %v231
    %250 = vmatprep.subr.mxu0 0.0
    %251 = vmatpush1.msra.mxu0 %v230
    %252 = vmatprep.subr.mxu0 0.0
    %253 = vmatpush1.msra.mxu0 %v229
    %254 = vmatprep.subr.mxu0 0.0
    %255 = vmatpush1.msra.mxu0 %v228
    %256 = vmatprep.subr.mxu0 0.0
    %257 = vmatpush1.msra.mxu0 %v227
    %258 = vmatprep.subr.mxu0 0.0
    %259 = vmatpush1.msra.mxu0 %v226
    %260 = vmatprep.subr.mxu0 0.0
    %261 = vmatpush1.msra.mxu0 %v225
    %262 = vmatprep.subr.mxu0 0.0
    %263 = vmatpush1.msra.mxu0 %v224
    %264 = vmatprep.subr.mxu0 0.0
    %265 = vmatpush1.msra.mxu0 %v223
    %266 = vmatprep.subr.mxu0 0.0
    %267 = vmatpush1.msra.mxu0 %v222
    %268 = vmatprep.subr.mxu0 0.0
    %269 = vmatpush1.msra.mxu0 %v221
    %270 = vmatprep.subr.mxu0 0.0
    %271 = vmatpush1.msra.mxu0 %v220
    %272 = vmatprep.subr.mxu0 0.0
    %273 = vmatpush1.msra.mxu0 %v219
    %274 = vmatprep.subr.mxu0 0.0
    %275 = vmatpush2.msra.mxu0 0.0
    %276 = vmatprep.subr.mxu0 0.0
    %277 = vmatpush2.msra.mxu0 0.0
    %278 = vmatprep.subr.mxu0 0.0
    %279 = vmatpush2.msra.mxu0 0.0
    %280 = vmatprep.subr.mxu0 0.0
    %281 = vmatpush2.msra.mxu0 0.0
    %282 = vmatprep.subr.mxu0 0.0
    %283 = vmatpush2.msra.mxu0 0.0
    %284 = vmatprep.subr.mxu0 0.0
    %285 = vmatpush2.msra.mxu0 0.0
    %286 = vmatprep.subr.mxu0 0.0
    %287 = vmatpush2.msra.mxu0 0.0
    %288 = vmatprep.subr.mxu0 0.0
    %289 = vmatpush2.msra.mxu0 0.0
    %290 = vmatprep.subr.mxu0 0.0
    %291 = vmatpush2.msra.mxu0 0.0
    %292 = vmatprep.subr.mxu0 0.0
    %293 = vmatpush2.msra.mxu0 0.0
    %294 = vmatprep.subr.mxu0 0.0
    %295 = vmatpush2.msra.mxu0 0.0
    %296 = vmatprep.subr.mxu0 0.0
    %297 = vmatpush2.msra.mxu0 0.0
    %298 = vmatprep.subr.mxu0 0.0
    %299 = vmatpush2.msra.mxu0 0.0
    %300 = vmatprep.subr.mxu0 0.0
    %301 = vmatpush2.msra.mxu0 0.0
    %302 = vmatprep.subr.mxu0 0.0
    %303 = vmatpush2.msra.mxu0 0.0
    %304 = vmatprep.subr.mxu0 0.0
    %305 = vmatpush2.msra.mxu0 0.0
    %306 = vmatprep.mubr.f32.mxu0 0.0
    %307 = vmatmul.mubr.f32.gmra.mxu0 %v212
    %v308 = vpop.f32.mrf.mxu0
    %v309 = vadd.f32 %v240, %v308
    %v310 = vpop.f32.mrf.mxu0
    %311 = vmatprep.mubr.f32.mxu0 0.0
    %312 = vmatmul.mubr.f32.gmra.mxu0 %v213
    %v313 = vpop.f32.mrf.mxu0
    %v314 = vadd.f32 %v240, %v313
    %v315 = vpop.f32.mrf.mxu0
    %316 = vmatprep.mubr.f32.mxu0 0.0
    %317 = vmatmul.mubr.f32.gmra.mxu0 %v214
    %v318 = vpop.f32.mrf.mxu0
    %v319 = vadd.f32 %v240, %v318
    %v320 = vpop.f32.mrf.mxu0
    %321 = vmatprep.mubr.f32.mxu0 0.0
    %322 = vmatmul.mubr.f32.gmra.mxu0 %v215
    %v323 = vpop.f32.mrf.mxu0
    %v324 = vadd.f32 %v240, %v323
    %v325 = vpop.f32.mrf.mxu0
    %326 = vmatprep.mubr.f32.mxu0 0.0
    %327 = vmatmul.mubr.f32.gmra.mxu0 %v216
    %v328 = vpop.f32.mrf.mxu0
    %v329 = vadd.f32 %v240, %v328
    %v330 = vpop.f32.mrf.mxu0
    %331 = vmatprep.mubr.f32.mxu0 0.0
    %332 = vmatmul.mubr.f32.gmra.mxu0 %v217
    %v333 = vpop.f32.mrf.mxu0
    %v334 = vadd.f32 %v240, %v333
    %v335 = vpop.f32.mrf.mxu0
    %336 = vmatprep.mubr.f32.mxu0 0.0
    %337 = vmatmul.mubr.f32.gmra.mxu0 %v218
    %v338 = vpop.f32.mrf.mxu0
    %v339 = vadd.f32 %v240, %v338
    %v340 = vpop.f32.mrf.mxu0
    %341 = vdwg.mxu0
    %v342 = vmax.f32 %v309, 0.0
    %v343 = vmax.f32 %v314, 0.0
    %v344 = vmax.f32 %v319, 0.0
    %v345 = vmax.f32 %v324, 0.0
    %v346 = vmax.f32 %v329, 0.0
    %v347 = vmax.f32 %v334, 0.0
    %v348 = vmax.f32 %v339, 0.0
    %v349 = vld [vmem:[#allocation8] sm:$0xff]
    %v350 = vld [vmem:[#allocation8 + $0x8] sm:$0xff]
    %v351 = vld [vmem:[#allocation8 + $0x10] sm:$0xff]
    %v352 = vld [vmem:[#allocation8 + $0x18] sm:$0xff]
    %v353 = vld [vmem:[#allocation8 + $0x20] sm:$0xff]
    %v354 = vld [vmem:[#allocation8 + $0x28] sm:$0xff]
    %v355 = vld [vmem:[#allocation8 + $0x30] sm:$0xff]
    %v356 = vld [vmem:[#allocation8 + $0x38] sm:$0xff]
    %v357 = vld [vmem:[#allocation8 + $0x40] sm:$0xff]
    %v358 = vld [vmem:[#allocation8 + $0x48] sm:$0xff]
    %v359 = vld [vmem:[#allocation8 + $0x50] sm:$0xff]
    %v360 = vld [vmem:[#allocation8 + $0x58] sm:$0xff]
    %v361 = vld [vmem:[#allocation8 + $0x60] sm:$0xff]
    %v362 = vld [vmem:[#allocation8 + $0x68] sm:$0xff]
    %v363 = vld [vmem:[#allocation8 + $0x70] sm:$0xff]
    %v364 = vld [vmem:[#allocation8 + $0x78] sm:$0xff]
    %v365 = vld [vmem:[%s6] sm:$0x1]
    %v367 = vlaneseq
    %v368 = vshrl.u32 %v367, 7
    %v369 = vsub.s32 0, %v368
    %v370 = vrot.slane %v365, %v369
    %372 = vmatprep.subr.mxu0 0.0
    %373 = vmatpush1.msra.mxu0 %v364
    %374 = vmatprep.subr.mxu0 0.0
    %375 = vmatpush1.msra.mxu0 %v363
    %376 = vmatprep.subr.mxu0 0.0
    %377 = vmatpush1.msra.mxu0 %v362
    %378 = vmatprep.subr.mxu0 0.0
    %379 = vmatpush1.msra.mxu0 %v361
    %380 = vmatprep.subr.mxu0 0.0
    %381 = vmatpush1.msra.mxu0 %v360
    %382 = vmatprep.subr.mxu0 0.0
    %383 = vmatpush1.msra.mxu0 %v359
    %384 = vmatprep.subr.mxu0 0.0
    %385 = vmatpush1.msra.mxu0 %v358
    %386 = vmatprep.subr.mxu0 0.0
    %387 = vmatpush1.msra.mxu0 %v357
    %388 = vmatprep.subr.mxu0 0.0
    %389 = vmatpush1.msra.mxu0 %v356
    %390 = vmatprep.subr.mxu0 0.0
    %391 = vmatpush1.msra.mxu0 %v355
    %392 = vmatprep.subr.mxu0 0.0
    %393 = vmatpush1.msra.mxu0 %v354
    %394 = vmatprep.subr.mxu0 0.0
    %395 = vmatpush1.msra.mxu0 %v353
    %396 = vmatprep.subr.mxu0 0.0
    %397 = vmatpush1.msra.mxu0 %v352
    %398 = vmatprep.subr.mxu0 0.0
    %399 = vmatpush1.msra.mxu0 %v351
    %400 = vmatprep.subr.mxu0 0.0
    %401 = vmatpush1.msra.mxu0 %v350
    %402 = vmatprep.subr.mxu0 0.0
    %403 = vmatpush1.msra.mxu0 %v349
    %404 = vmatprep.subr.mxu0 0.0
    %405 = vmatpush2.msra.mxu0 0.0
    %406 = vmatprep.subr.mxu0 0.0
    %407 = vmatpush2.msra.mxu0 0.0
    %408 = vmatprep.subr.mxu0 0.0
    %409 = vmatpush2.msra.mxu0 0.0
    %410 = vmatprep.subr.mxu0 0.0
    %411 = vmatpush2.msra.mxu0 0.0
    %412 = vmatprep.subr.mxu0 0.0
    %413 = vmatpush2.msra.mxu0 0.0
    %414 = vmatprep.subr.mxu0 0.0
    %415 = vmatpush2.msra.mxu0 0.0
    %416 = vmatprep.subr.mxu0 0.0
    %417 = vmatpush2.msra.mxu0 0.0
    %418 = vmatprep.subr.mxu0 0.0
    %419 = vmatpush2.msra.mxu0 0.0
    %420 = vmatprep.subr.mxu0 0.0
    %421 = vmatpush2.msra.mxu0 0.0
    %422 = vmatprep.subr.mxu0 0.0
    %423 = vmatpush2.msra.mxu0 0.0
    %424 = vmatprep.subr.mxu0 0.0
    %425 = vmatpush2.msra.mxu0 0.0
    %426 = vmatprep.subr.mxu0 0.0
    %427 = vmatpush2.msra.mxu0 0.0
    %428 = vmatprep.subr.mxu0 0.0
    %429 = vmatpush2.msra.mxu0 0.0
    %430 = vmatprep.subr.mxu0 0.0
    %431 = vmatpush2.msra.mxu0 0.0
    %432 = vmatprep.subr.mxu0 0.0
    %433 = vmatpush2.msra.mxu0 0.0
    %434 = vmatprep.subr.mxu0 0.0
    %435 = vmatpush2.msra.mxu0 0.0
    %436 = vmatprep.mubr.f32.mxu0 0.0
    %437 = vmatmul.mubr.f32.gmra.mxu0 %v342
    %v438 = vpop.f32.mrf.mxu0
    %v439 = vadd.f32 %v370, %v438
    %v440 = vpop.f32.mrf.mxu0
    %441 = vmatprep.mubr.f32.mxu0 0.0
    %442 = vmatmul.mubr.f32.gmra.mxu0 %v343
    %v443 = vpop.f32.mrf.mxu0
    %v444 = vadd.f32 %v370, %v443
    %v445 = vpop.f32.mrf.mxu0
    %446 = vmatprep.mubr.f32.mxu0 0.0
    %447 = vmatmul.mubr.f32.gmra.mxu0 %v344
    %v448 = vpop.f32.mrf.mxu0
    %v449 = vadd.f32 %v370, %v448
    %v450 = vpop.f32.mrf.mxu0
    %451 = vmatprep.mubr.f32.mxu0 0.0
    %452 = vmatmul.mubr.f32.gmra.mxu0 %v345
    %v453 = vpop.f32.mrf.mxu0
    %v454 = vadd.f32 %v370, %v453
    %v455 = vpop.f32.mrf.mxu0
    %456 = vmatprep.mubr.f32.mxu0 0.0
    %457 = vmatmul.mubr.f32.gmra.mxu0 %v346
    %v458 = vpop.f32.mrf.mxu0
    %v459 = vadd.f32 %v370, %v458
    %v460 = vpop.f32.mrf.mxu0
    %461 = vmatprep.mubr.f32.mxu0 0.0
    %462 = vmatmul.mubr.f32.gmra.mxu0 %v347
    %v463 = vpop.f32.mrf.mxu0
    %v464 = vadd.f32 %v370, %v463
    %v465 = vpop.f32.mrf.mxu0
    %466 = vmatprep.mubr.f32.mxu0 0.0
    %467 = vmatmul.mubr.f32.gmra.mxu0 %v348
    %v468 = vpop.f32.mrf.mxu0
    %v469 = vadd.f32 %v370, %v468
    %v470 = vpop.f32.mrf.mxu0
    %471 = vdwg.mxu0
    %472 = vmax.xlane.f32.xlu0 %v439
    %v473 = vpop.xlane.xlu0 %472
    %474 = vmax.xlane.f32.xlu0 %v444
    %v475 = vpop.xlane.xlu0 %474
    %476 = vmax.xlane.f32.xlu0 %v449
    %v477 = vpop.xlane.xlu0 %476
    %478 = vmax.xlane.f32.xlu0 %v454
    %v479 = vpop.xlane.xlu0 %478
    %480 = vmax.xlane.f32.xlu0 %v459
    %v481 = vpop.xlane.xlu0 %480
    %482 = vmax.xlane.f32.xlu0 %v464
    %v483 = vpop.xlane.xlu0 %482
    %484 = vmax.xlane.f32.xlu0 %v469
    %v485 = vpop.xlane.xlu0 %484
    %v486 = vsub.f32 %v439, %v473
    %v487 = vsub.f32 %v444, %v475
    %v488 = vsub.f32 %v449, %v477
    %v489 = vsub.f32 %v454, %v479
    %v490 = vsub.f32 %v459, %v481
    %v491 = vsub.f32 %v464, %v483
    %v492 = vsub.f32 %v469, %v485
    %v493 = vmul.f32 %v486, 1.442695
    %v494 = vpow.pop %v493
    %v495 = vmul.f32 %v487, 1.442695
    %v496 = vpow.pop %v495
    %v497 = vmul.f32 %v488, 1.442695
    %v498 = vpow.pop %v497
    %v499 = vmul.f32 %v489, 1.442695
    %v500 = vpow.pop %v499
    %v501 = vmul.f32 %v490, 1.442695
    %v502 = vpow.pop %v501
    %v503 = vmul.f32 %v491, 1.442695
    %v504 = vpow.pop %v503
    %v505 = vmul.f32 %v492, 1.442695
    %v506 = vpow.pop %v505
    %507 = vadd.xlane.f32.xlu0 %v494
    %v508 = vpop.xlane.xlu0 %507
    %509 = vadd.xlane.f32.xlu0 %v496
    %v510 = vpop.xlane.xlu0 %509
    %511 = vadd.xlane.f32.xlu0 %v498
    %v512 = vpop.xlane.xlu0 %511
    %513 = vadd.xlane.f32.xlu0 %v500
    %v514 = vpop.xlane.xlu0 %513
    %515 = vadd.xlane.f32.xlu0 %v502
    %v516 = vpop.xlane.xlu0 %515
    %517 = vadd.xlane.f32.xlu0 %v504
    %v518 = vpop.xlane.xlu0 %517
    %519 = vadd.xlane.f32.xlu0 %v506
    %v520 = vpop.xlane.xlu0 %519
    %v521 = vrcp.pop %v508
    %v522 = vmul.f32 %v494, %v521
    %v523 = vrcp.pop %v510
    %v524 = vmul.f32 %v496, %v523
    %v525 = vrcp.pop %v512
    %v526 = vmul.f32 %v498, %v525
    %v527 = vrcp.pop %v514
    %v528 = vmul.f32 %v500, %v527
    %v529 = vrcp.pop %v516
    %v530 = vmul.f32 %v502, %v529
    %v531 = vrcp.pop %v518
    %v532 = vmul.f32 %v504, %v531
    %v533 = vrcp.pop %v520
    %v534 = vmul.f32 %v506, %v533
    %535 = vst [vmem:[#allocation10] sm:$0xff] %v522
    %536 = vst [vmem:[#allocation10 + $0x8] sm:$0xff] %v524
    %537 = vst [vmem:[#allocation10 + $0x10] sm:$0xff] %v526
    %538 = vst [vmem:[#allocation10 + $0x18] sm:$0xff] %v528
    %539 = vst [vmem:[#allocation10 + $0x20] sm:$0xff] %v530
    %540 = vst [vmem:[#allocation10 + $0x28] sm:$0xff] %v532
    %541 = vst [vmem:[#allocation10 + $0x30] sm:$0xff] %v534
    // Predicated region
    $region46: #{tpu_custom_call.1} parent=1 // pred_check
      _
    $region47: #{tpu_custom_call.1} parent=1 // pred_check_branch
      %543 = sbr.rel (0) target = $region49
    $region48: #{tpu_custom_call.1} parent=1 // pred_region
      %s545 = ssub.s32 896, 896
      %546 = vsyncadd [#allocation4], %s545
      %s547 = sshll.u32 [#allocation10], 4
      %s548 = int_to_ptr.vmem [resolvable:$true] %s547
      %553 = dma.vmem_to_hbm [thread:$0]  %s548, 896, %s7, [#allocation4], 128, 128, 8
    $region49: #{tpu_custom_call.1} parent=1 // pred_fallthru
      _
    // Predicated region
    $region50: #{tpu_custom_call.1} parent=1 // pred_check
      _
    $region51: #{tpu_custom_call.1} parent=1 // pred_check_branch
      %555 = sbr.rel (0) target = $region53
    $region52: #{tpu_custom_call.1} parent=1 // pred_region
      %556 = dma.done [#allocation4], 896
    $region53: #{tpu_custom_call.1} parent=1 // pred_fallthru
      _
    %557 = vsyncpa [#allocation3], 1
    %558 = vsyncpa [#allocation6], 1
    %559 = vsyncpa [#allocation9], 1
    %560 = vsyncpa [#allocation4], 1

</llo_original>
